<compile_context>
chip_gen: v5e
topology: v5e:2x2
jax: 0.10.0
libtpu: 0.0.40
codegen_flags: <defaults>
</compile_context>

<pallas_src>
import functools

import jax
import jax.numpy as jnp
from jax.experimental import pallas as pl
from jax.experimental.pallas import tpu as pltpu

# ---- "C" constants (small, synthetic) ---------------------------------------
C_EMB = 32        # C.EMB
ITEM_NUM = 50     # C.item_num
USER_NUM = 24     # C.user_num
NUM_Q = 50        # C.NUM_OF_QUESTIONS
HIDDEN = 32       # hidden_dim
BATCH = 2
SEQ = 8
LANE = 128        # per-head lane padding -> packed logit store is lane-dense


def _full_spec(shape):
    """Whole-array block for a grid=(1,) kernel."""
    return pl.BlockSpec(shape, lambda i: (0,) * len(shape))


# ===================== kernel A: one-time graph precompute ====================
def _graph_kernel(ques_ref, stus_ref, g_ref, ui_ref, iu_ref,
                  w1_ref, b1_ref, w2_ref, b2_ref, qcat_ref):
    f32 = jnp.float32
    ques = ques_ref[...]
    G = g_ref[...]

    # SkillGraph: HGNN (two HGNN_conv layers: G @ (X @ W + b), ReLU after 1st;
    # dropout omitted = eval mode)
    h1 = jnp.dot(ques, w1_ref[...], preferred_element_type=f32) + b1_ref[...]
    h1 = jnp.maximum(jnp.dot(G, h1, preferred_element_type=f32), 0.0)
    h2 = jnp.dot(h1, w2_ref[...], preferred_element_type=f32) + b2_ref[...]
    ques_h = jnp.dot(G, h2, preferred_element_type=f32)              # (ITEM, E)

    # AbilityGraph: LightGCN-style propagation (net3 output overwritten by net4
    # in torch, so a single BPR pass suffices).
    # TODO(synk): exact BPR.forward source not provided; using 2-hop LightGCN
    # propagation with layer averaging over the bipartite matrices.
    iu = iu_ref[...]
    items1 = jnp.dot(iu, stus_ref[...], preferred_element_type=f32)
    users1 = jnp.dot(ui_ref[...], ques, preferred_element_type=f32)
    items2 = jnp.dot(iu, users1, preferred_element_type=f32)
    ques_light = (ques + items1 + items2) * (1.0 / 3.0)              # (ITEM, E)

    qcat_ref[...] = jnp.concatenate([ques_h, ques_light], axis=1)    # (ITEM, 2E)


def graph_embeddings(p):
    """Param-only precompute: concat([ques_h, ques_light], axis=1)."""
    return pl.pallas_call(
        _graph_kernel,
        out_shape=jax.ShapeDtypeStruct((ITEM_NUM, 2 * C_EMB), jnp.float32),
        grid=(1,),
        in_specs=[_full_spec((ITEM_NUM, C_EMB)),
                  _full_spec((USER_NUM, C_EMB)),
                  _full_spec((ITEM_NUM, ITEM_NUM)),
                  _full_spec((USER_NUM, ITEM_NUM)),
                  _full_spec((ITEM_NUM, USER_NUM)),
                  _full_spec((C_EMB, C_EMB)),
                  _full_spec((1, C_EMB)),
                  _full_spec((C_EMB, C_EMB)),
                  _full_spec((1, C_EMB))],
        out_specs=_full_spec((ITEM_NUM, 2 * C_EMB)),
        compiler_params=pltpu.CompilerParams(dimension_semantics=("arbitrary",)),
    )(p["ques"], p["stus"], p["G"], p["user_item"], p["item_user"],
      p["hgnn_w1"], p["hgnn_b1"].reshape(1, -1),
      p["hgnn_w2"], p["hgnn_b2"].reshape(1, -1))


# ================== kernel B: whole sequence forward, fused ===================
def _seq_kernel(x_ref, qcat_ref, wqkv_ref, bqkv_ref, wih_ref, whh_ref,
                bih_ref, bhh_ref, mh_ref, thw_ref, thb_ref, hdw_ref, hdb_ref,
                out_ref, *, B, S, E, H):
    f32 = jnp.float32
    x2 = x_ref[...]                                   # (B*S, NUM_Q)
    qcat = qcat_ref[...]                              # (ITEM, 2E)

    # ---- choose-50: both streams with one wide matmul -----------------------
    x_hl = jnp.dot(x2, qcat, preferred_element_type=f32)            # (B*S, 2E)
    x_comb = jnp.concatenate([x_hl[:, :E], x_hl[:, E:]], axis=0)    # (2B*S, E)

    # ---- shared fused-QKV attention for both streams (same Wq/Wk/Wv) --------
    qkv = jnp.dot(x_comb, wqkv_ref[...], preferred_element_type=f32) + bqkv_ref[...]
    qkv = qkv.reshape(2 * B, S, 3 * E)
    q = qkv[:, :, 0:E]
    k = qkv[:, :, E:2 * E]
    v = qkv[:, :, 2 * E:3 * E]

    s = jnp.einsum('bqd,bkd->bqk', q, k, preferred_element_type=f32)  # (2B,S,S)
    s = s - jnp.max(s, axis=-1, keepdims=True)
    e = jnp.exp(s)
    attn = e * pl.reciprocal(jnp.sum(e, axis=-1, keepdims=True), approx=True)
    att = jnp.einsum('bqk,bkd->bqd', attn, v, preferred_element_type=f32)  # (2B,S,E)

    # ---- both GRUs -----------------------------------------------------------
    # Input-to-hidden gates for ALL timesteps and BOTH streams: one big matmul
    # (hoisted out of the sequential recurrence).  Streams are selected by the
    # per-row mask m_h (1 = h-stream rows, 0 = light-stream rows).
    m_h = mh_ref[...]                                 # (2B, 1)
    m_l = 1.0 - m_h
    att_big = jnp.concatenate([att * m_h[:, None, :],
                               att * m_l[:, None, :]], axis=-1)      # (2B,S,2E)
    gi_all = jnp.dot(att_big.reshape(2 * B * S, 2 * E), wih_ref[...],
                     preferred_element_type=f32)                     # (2B*S,3H)
    gi_all = gi_all.reshape(2 * B, S, 3 * H) + bih_ref[...][:, None, :]

    whh = whh_ref[...]                                # (2H, 3H) hoisted load
    bhh = bhh_ref[...]                                # (2B, 3H)
    mask_hh = jnp.concatenate([jnp.broadcast_to(m_h, (2 * B, H)),
                               jnp.broadcast_to(m_l, (2 * B, H))], axis=1)

    h_state = jnp.zeros((2 * B, H), f32)
    oh_steps = []
    ol_steps = []
    for t in range(S):                                # static unroll (S small)
        h_big = jnp.concatenate([h_state, h_state], axis=1) * mask_hh  # (2B,2H)
        gh = jnp.dot(h_big, whh, preferred_element_type=f32) + bhh     # (2B,3H)
        gi = gi_all[:, t, :]                                           # (2B,3H)
        # PyTorch GRU gate order: r, z, n
        r = jax.nn.sigmoid(gi[:, 0:H] + gh[:, 0:H])
        zg = jax.nn.sigmoid(gi[:, H:2 * H] + gh[:, H:2 * H])
        n = jnp.tanh(gi[:, 2 * H:3 * H] + r * gh[:, 2 * H:3 * H])
        h_state = (1.0 - zg) * n + zg * h_state
        oh_steps.append(h_state[:B])                  # h-stream rows
        ol_steps.append(h_state[B:])                  # light-stream rows

    oh = jnp.concatenate(oh_steps, axis=0)            # (S*B, H), rows = (t, b)
    ol = jnp.concatenate(ol_steps, axis=0)            # (S*B, H)

    # ---- kd gate + all three heads in one lane-dense padded matmul ----------
    theta = jax.nn.sigmoid(
        jnp.dot(jnp.concatenate([oh, ol], axis=1), thw_ref[...],
                preferred_element_type=f32) + thb_ref[...])
    # torch computes out_d = theta * out_light but never uses it.
    oh_mod = (1.0 - theta) * oh
    cat_all = jnp.concatenate([oh, ol, oh_mod], axis=1)            # (S*B, 3H)
    out_ref[...] = (jnp.dot(cat_all, hdw_ref[...], preferred_element_type=f32)
                    + hdb_ref[...])                                # (S*B, 3*LANE)


def dkt_forward(x, packed):
    """x: (B, S, NUM_Q) one-hot interactions; packed: output of pack_params."""
    B, S, Q = x.shape
    x2 = x.reshape(B * S, Q)

    out = pl.pallas_call(
        functools.partial(_seq_kernel, B=B, S=S, E=C_EMB, H=HIDDEN),
        out_shape=jax.ShapeDtypeStruct((S * B, 3 * LANE), jnp.float32),
        grid=(1,),
        in_specs=[_full_spec((B * S, Q)),
                  _full_spec((ITEM_NUM, 2 * C_EMB)),
                  _full_spec((C_EMB, 3 * C_EMB)),
                  _full_spec((1, 3 * C_EMB)),
                  _full_spec((2 * C_EMB, 3 * HIDDEN)),
                  _full_spec((2 * HIDDEN, 3 * HIDDEN)),
                  _full_spec((2 * B, 3 * HIDDEN)),
                  _full_spec((2 * B, 3 * HIDDEN)),
                  _full_spec((2 * B, 1)),
                  _full_spec((2 * HIDDEN, HIDDEN)),
                  _full_spec((1, HIDDEN)),
                  _full_spec((3 * HIDDEN, 3 * LANE)),
                  _full_spec((1, 3 * LANE))],
        out_specs=_full_spec((S * B, 3 * LANE)),
        compiler_params=pltpu.CompilerParams(dimension_semantics=("arbitrary",)),
    )(x2, packed["qcat"], packed["wqkv"], packed["bqkv"],
      packed["gru_wih"], packed["gru_whh"], packed["gru_bih"], packed["gru_bhh"],
      packed["m_h"], packed["theta_w"], packed["theta_b"],
      packed["heads_w"], packed["heads_b"])

    # Unpack the lane-dense (S*B, 384) slab: rows are (t, b); heads at lane
    # offsets 0 / 128 / 256 (wrapper-side layout plumbing only).
    out3 = out.reshape(S, B, 3 * LANE).transpose(1, 0, 2)          # (B, S, 384)
    logit_h = out3[..., 0:NUM_Q]
    logit_light = out3[..., LANE:LANE + NUM_Q]
    ensemble_logit = out3[..., 2 * LANE:2 * LANE + NUM_Q]
    return logit_h, logit_light, ensemble_logit


# ----------------------- param packing (done once, hoisted) -------------------
def pack_params(p, batch):
    E, H = C_EMB, HIDDEN
    packed = {}

    # graph embeddings: param-only -> computed once here, not per forward call
    packed["qcat"] = graph_embeddings(p)                           # (ITEM, 2E)

    # fused QKV (shared by both streams)
    packed["wqkv"] = jnp.concatenate([p["wq"], p["wk"], p["wv"]], axis=1)
    packed["bqkv"] = jnp.concatenate([p["bq"], p["bk"], p["bv"]]).reshape(1, 3 * E)

    # fused GRU weights: both streams stacked along rows; the stream is picked
    # per batch-row inside the kernel via the m_h / (1 - m_h) masks.
    packed["gru_wih"] = jnp.concatenate([p["g1_wih"], p["g3_wih"]], axis=0)  # (2E,3H)
    packed["gru_whh"] = jnp.concatenate([p["g1_whh"], p["g3_whh"]], axis=0)  # (2H,3H)
    packed["gru_bih"] = jnp.concatenate(
        [jnp.tile(p["g1_bih"].reshape(1, -1), (batch, 1)),
         jnp.tile(p["g3_bih"].reshape(1, -1), (batch, 1))], axis=0)          # (2B,3H)
    packed["gru_bhh"] = jnp.concatenate(
        [jnp.tile(p["g1_bhh"].reshape(1, -1), (batch, 1)),
         jnp.tile(p["g3_bhh"].reshape(1, -1), (batch, 1))], axis=0)          # (2B,3H)
    packed["m_h"] = (jnp.arange(2 * batch) < batch).astype(jnp.float32).reshape(-1, 1)

    # kd gate: theta = sigmoid([oh|ol] @ [W1;W2] + (b1+b2))
    packed["theta_w"] = jnp.concatenate([p["w1_w"], p["w2_w"]], axis=0)
    packed["theta_b"] = (p["w1_b"] + p["w2_b"]).reshape(1, H)

    # all three heads in one (3H, 3*128) padded weight (lane-dense output)
    hw = jnp.zeros((3 * H, 3 * LANE), jnp.float32)
    hw = hw.at[0:H, 0:NUM_Q].set(p["fch_w"])                       # logit_h  <- oh
    hw = hw.at[H:2 * H, LANE:LANE + NUM_Q].set(p["fcl_w"])         # logit_l  <- ol
    hw = hw.at[H:2 * H, 2 * LANE:2 * LANE + NUM_Q].set(p["ens_w2"])      # ens <- ol
    hw = hw.at[2 * H:3 * H, 2 * LANE:2 * LANE + NUM_Q].set(p["ens_w1"])  # ens <- oh_mod
    packed["heads_w"] = hw
    hb = jnp.zeros((1, 3 * LANE), jnp.float32)
    hb = hb.at[0, 0:NUM_Q].set(p["fch_b"])
    hb = hb.at[0, LANE:LANE + NUM_Q].set(p["fcl_b"])
    hb = hb.at[0, 2 * LANE:2 * LANE + NUM_Q].set(p["ens_b"])
    packed["heads_b"] = hb
    return packed


# --------------------------- deterministic params ------------------------------
def init_params(key):
    ks = jax.random.split(key, 33)

    def nrm(k, shape, scale=0.1):
        return (scale * jax.random.normal(k, shape)).astype(jnp.float32)

    p = {}
    p["ques"] = nrm(ks[0], (ITEM_NUM, C_EMB))
    p["stus"] = nrm(ks[1], (USER_NUM, C_EMB))
    g = jnp.abs(nrm(ks[2], (ITEM_NUM, ITEM_NUM), 1.0))
    p["G"] = g / jnp.sum(g, axis=1, keepdims=True)            # hypergraph Laplacian surrogate
    ui = jnp.abs(nrm(ks[3], (USER_NUM, ITEM_NUM), 1.0))
    p["user_item"] = ui / jnp.sum(ui, axis=1, keepdims=True)
    p["item_user"] = ui.T / jnp.sum(ui.T, axis=1, keepdims=True)
    p["hgnn_w1"] = nrm(ks[4], (C_EMB, C_EMB)); p["hgnn_b1"] = nrm(ks[5], (C_EMB,))
    p["hgnn_w2"] = nrm(ks[6], (C_EMB, C_EMB)); p["hgnn_b2"] = nrm(ks[7], (C_EMB,))
    p["wq"] = nrm(ks[8], (C_EMB, C_EMB));  p["bq"] = nrm(ks[9], (C_EMB,))
    p["wk"] = nrm(ks[10], (C_EMB, C_EMB)); p["bk"] = nrm(ks[11], (C_EMB,))
    p["wv"] = nrm(ks[12], (C_EMB, C_EMB)); p["bv"] = nrm(ks[13], (C_EMB,))
    p["g1_wih"] = nrm(ks[14], (C_EMB, 3 * HIDDEN)); p["g1_whh"] = nrm(ks[15], (HIDDEN, 3 * HIDDEN))
    p["g1_bih"] = nrm(ks[16], (3 * HIDDEN,));       p["g1_bhh"] = nrm(ks[17], (3 * HIDDEN,))
    p["g3_wih"] = nrm(ks[18], (C_EMB, 3 * HIDDEN)); p["g3_whh"] = nrm(ks[19], (HIDDEN, 3 * HIDDEN))
    p["g3_bih"] = nrm(ks[20], (3 * HIDDEN,));       p["g3_bhh"] = nrm(ks[21], (3 * HIDDEN,))
    p["fch_w"] = nrm(ks[22], (HIDDEN, NUM_Q)); p["fch_b"] = nrm(ks[23], (NUM_Q,))
    p["fcl_w"] = nrm(ks[24], (HIDDEN, NUM_Q)); p["fcl_b"] = nrm(ks[25], (NUM_Q,))
    p["ens_w1"] = nrm(ks[26], (HIDDEN, NUM_Q))   # fc_ensemble weight, first H rows (oh_mod)
    p["ens_w2"] = nrm(ks[27], (HIDDEN, NUM_Q))   # fc_ensemble weight, last H rows (ol)
    p["ens_b"] = nrm(ks[28], (NUM_Q,))
    p["w1_w"] = nrm(ks[29], (HIDDEN, HIDDEN)); p["w1_b"] = nrm(ks[30], (HIDDEN,))
    p["w2_w"] = nrm(ks[31], (HIDDEN, HIDDEN)); p["w2_b"] = nrm(ks[32], (HIDDEN,))
    return p


if __name__ == "__main__":
    key = jax.random.PRNGKey(0)
    pkey, xkey = jax.random.split(key)
    params = init_params(pkey)

    # One-time, hoisted out of the hot forward: graph precompute + weight fusion.
    packed = pack_params(params, batch=BATCH)
    packed = jax.tree_util.tree_map(jax.block_until_ready, packed)

    # x: one-hot question-interaction tensor, (batch, seq, NUM_OF_QUESTIONS)
    idx = jax.random.randint(xkey, (BATCH, SEQ), 0, NUM_Q)
    x = jax.nn.one_hot(idx, NUM_Q, dtype=jnp.float32)

    fwd = jax.jit(dkt_forward)
    logit_h, logit_light, ens = fwd(x, packed)
    jax.block_until_ready((logit_h, logit_light, ens))

    assert logit_h.shape == (BATCH, SEQ, NUM_Q)
    assert logit_light.shape == (BATCH, SEQ, NUM_Q)
    assert ens.shape == (BATCH, SEQ, NUM_Q)
    assert bool(jnp.all(jnp.isfinite(logit_h)) & jnp.all(jnp.isfinite(logit_light))
                & jnp.all(jnp.isfinite(ens)))
    print("KERNEL_OK")
</pallas_src>

<mosaic_0001>
module attributes {stable_mosaic.version = 11 : i64} {
  func.func @_graph_kernel(%arg0: i32, %arg1: memref<50x32xf32, #tpu.memory_space<vmem>>, %arg2: memref<24x32xf32, #tpu.memory_space<vmem>>, %arg3: memref<50x50xf32, #tpu.memory_space<vmem>>, %arg4: memref<24x50xf32, #tpu.memory_space<vmem>>, %arg5: memref<50x24xf32, #tpu.memory_space<vmem>>, %arg6: memref<32x32xf32, #tpu.memory_space<vmem>>, %arg7: memref<1x32xf32, #tpu.memory_space<vmem>>, %arg8: memref<32x32xf32, #tpu.memory_space<vmem>>, %arg9: memref<1x32xf32, #tpu.memory_space<vmem>>, %arg10: memref<50x64xf32, #tpu.memory_space<vmem>>) attributes {dimension_semantics = [#tpu.dimension_semantics<arbitrary>], iteration_bounds = array<i64: 1>, scalar_prefetch = 0 : i64, scratch_operands = 0 : i64, tpu.core_type = #tpu.core_type<tc>, window_params = [{pipeline_mode = #tpu.pipeline_mode<synchronous>, transform_indices = @transform_0, window_bounds = array<i64: 50, 32>}, {pipeline_mode = #tpu.pipeline_mode<synchronous>, transform_indices = @transform_1, window_bounds = array<i64: 24, 32>}, {pipeline_mode = #tpu.pipeline_mode<synchronous>, transform_indices = @transform_2, window_bounds = array<i64: 50, 50>}, {pipeline_mode = #tpu.pipeline_mode<synchronous>, transform_indices = @transform_3, window_bounds = array<i64: 24, 50>}, {pipeline_mode = #tpu.pipeline_mode<synchronous>, transform_indices = @transform_4, window_bounds = array<i64: 50, 24>}, {pipeline_mode = #tpu.pipeline_mode<synchronous>, transform_indices = @transform_5, window_bounds = array<i64: 32, 32>}, {pipeline_mode = #tpu.pipeline_mode<synchronous>, transform_indices = @transform_6, window_bounds = array<i64: 1, 32>}, {pipeline_mode = #tpu.pipeline_mode<synchronous>, transform_indices = @transform_7, window_bounds = array<i64: 32, 32>}, {pipeline_mode = #tpu.pipeline_mode<synchronous>, transform_indices = @transform_8, window_bounds = array<i64: 1, 32>}, {pipeline_mode = #tpu.pipeline_mode<synchronous>, transform_indices = @transform_9, window_bounds = array<i64: 50, 64>}]} {
    %c0 = arith.constant 0 : index
    %c0_0 = arith.constant 0 : index
    %0 = vector.load %arg1[%c0, %c0_0] : memref<50x32xf32, #tpu.memory_space<vmem>>, vector<50x32xf32>
    %c0_1 = arith.constant 0 : index
    %c0_2 = arith.constant 0 : index
    %1 = vector.load %arg3[%c0_1, %c0_2] : memref<50x50xf32, #tpu.memory_space<vmem>>, vector<50x50xf32>
    %c0_3 = arith.constant 0 : index
    %c0_4 = arith.constant 0 : index
    %2 = vector.load %arg6[%c0_3, %c0_4] : memref<32x32xf32, #tpu.memory_space<vmem>>, vector<32x32xf32>
    %cst = arith.constant dense<0.000000e+00> : vector<50x32xf32>
    %3 = tpu.matmul %0, %2, %cst {dimension_numbers = #tpu.dot_dimension_numbers<[1], [0], [0], [1], [0, 0, 1, 1], [], []>} : vector<50x32xf32>, vector<32x32xf32>, vector<50x32xf32> -> vector<50x32xf32>
    %c0_5 = arith.constant 0 : index
    %c0_6 = arith.constant 0 : index
    %4 = vector.load %arg7[%c0_5, %c0_6] : memref<1x32xf32, #tpu.memory_space<vmem>>, vector<1x32xf32>
    %5 = vector.broadcast %4 : vector<1x32xf32> to vector<50x32xf32>
    %6 = arith.addf %3, %5 : vector<50x32xf32>
    %cst_7 = arith.constant dense<0.000000e+00> : vector<50x32xf32>
    %7 = tpu.matmul %1, %6, %cst_7 {dimension_numbers = #tpu.dot_dimension_numbers<[1], [0], [0], [1], [0, 0, 1, 1], [], []>} : vector<50x50xf32>, vector<50x32xf32>, vector<50x32xf32> -> vector<50x32xf32>
    %cst_8 = arith.constant 0.000000e+00 : f32
    %8 = vector.broadcast %cst_8 : f32 to vector<50x32xf32>
    %9 = arith.maximumf %7, %8 : vector<50x32xf32>
    %c0_9 = arith.constant 0 : index
    %c0_10 = arith.constant 0 : index
    %10 = vector.load %arg8[%c0_9, %c0_10] : memref<32x32xf32, #tpu.memory_space<vmem>>, vector<32x32xf32>
    %cst_11 = arith.constant dense<0.000000e+00> : vector<50x32xf32>
    %11 = tpu.matmul %9, %10, %cst_11 {dimension_numbers = #tpu.dot_dimension_numbers<[1], [0], [0], [1], [0, 0, 1, 1], [], []>} : vector<50x32xf32>, vector<32x32xf32>, vector<50x32xf32> -> vector<50x32xf32>
    %c0_12 = arith.constant 0 : index
    %c0_13 = arith.constant 0 : index
    %12 = vector.load %arg9[%c0_12, %c0_13] : memref<1x32xf32, #tpu.memory_space<vmem>>, vector<1x32xf32>
    %13 = vector.broadcast %12 : vector<1x32xf32> to vector<50x32xf32>
    %14 = arith.addf %11, %13 : vector<50x32xf32>
    %cst_14 = arith.constant dense<0.000000e+00> : vector<50x32xf32>
    %15 = tpu.matmul %1, %14, %cst_14 {dimension_numbers = #tpu.dot_dimension_numbers<[1], [0], [0], [1], [0, 0, 1, 1], [], []>} : vector<50x50xf32>, vector<50x32xf32>, vector<50x32xf32> -> vector<50x32xf32>
    %c0_15 = arith.constant 0 : index
    %c0_16 = arith.constant 0 : index
    %16 = vector.load %arg5[%c0_15, %c0_16] : memref<50x24xf32, #tpu.memory_space<vmem>>, vector<50x24xf32>
    %c0_17 = arith.constant 0 : index
    %c0_18 = arith.constant 0 : index
    %17 = vector.load %arg2[%c0_17, %c0_18] : memref<24x32xf32, #tpu.memory_space<vmem>>, vector<24x32xf32>
    %cst_19 = arith.constant dense<0.000000e+00> : vector<50x32xf32>
    %18 = tpu.matmul %16, %17, %cst_19 {dimension_numbers = #tpu.dot_dimension_numbers<[1], [0], [0], [1], [0, 0, 1, 1], [], []>} : vector<50x24xf32>, vector<24x32xf32>, vector<50x32xf32> -> vector<50x32xf32>
    %c0_20 = arith.constant 0 : index
    %c0_21 = arith.constant 0 : index
    %19 = vector.load %arg4[%c0_20, %c0_21] : memref<24x50xf32, #tpu.memory_space<vmem>>, vector<24x50xf32>
    %cst_22 = arith.constant dense<0.000000e+00> : vector<24x32xf32>
    %20 = tpu.matmul %19, %0, %cst_22 {dimension_numbers = #tpu.dot_dimension_numbers<[1], [0], [0], [1], [0, 0, 1, 1], [], []>} : vector<24x50xf32>, vector<50x32xf32>, vector<24x32xf32> -> vector<24x32xf32>
    %cst_23 = arith.constant dense<0.000000e+00> : vector<50x32xf32>
    %21 = tpu.matmul %16, %20, %cst_23 {dimension_numbers = #tpu.dot_dimension_numbers<[1], [0], [0], [1], [0, 0, 1, 1], [], []>} : vector<50x24xf32>, vector<24x32xf32>, vector<50x32xf32> -> vector<50x32xf32>
    %22 = arith.addf %0, %18 : vector<50x32xf32>
    %23 = arith.addf %22, %21 : vector<50x32xf32>
    %cst_24 = arith.constant 0.333333343 : f32
    %24 = vector.broadcast %cst_24 : f32 to vector<50x32xf32>
    %25 = arith.mulf %23, %24 : vector<50x32xf32>
    %26 = tpu.concatenate %15, %25 in 1 : vector<50x32xf32>, vector<50x32xf32> -> vector<50x64xf32>
    %c0_25 = arith.constant 0 : index
    %c0_26 = arith.constant 0 : index
    %27 = vector.load %arg10[%c0_25, %c0_26] : memref<50x64xf32, #tpu.memory_space<vmem>>, vector<50x64xf32>
    tpu.vector_store %arg10[%c0_25, %c0_26], %26 {strides = array<i32>} : memref<50x64xf32, #tpu.memory_space<vmem>>, vector<50x64xf32>,
    return
  }
  func.func @transform_0(%arg0: i32) -> (i32, i32) {
    %c0_i32 = arith.constant 0 : i32
    %c0_i32_0 = arith.constant 0 : i32
    %c0_i32_1 = arith.constant 0 : i32
    return %c0_i32, %c0_i32_0 : i32, i32
  }
  func.func @transform_1(%arg0: i32) -> (i32, i32) {
    %c0_i32 = arith.constant 0 : i32
    %c0_i32_0 = arith.constant 0 : i32
    %c0_i32_1 = arith.constant 0 : i32
    return %c0_i32, %c0_i32_0 : i32, i32
  }
  func.func @transform_2(%arg0: i32) -> (i32, i32) {
    %c0_i32 = arith.constant 0 : i32
    %c0_i32_0 = arith.constant 0 : i32
    %c0_i32_1 = arith.constant 0 : i32
    return %c0_i32, %c0_i32_0 : i32, i32
  }
  func.func @transform_3(%arg0: i32) -> (i32, i32) {
    %c0_i32 = arith.constant 0 : i32
    %c0_i32_0 = arith.constant 0 : i32
    %c0_i32_1 = arith.constant 0 : i32
    return %c0_i32, %c0_i32_0 : i32, i32
  }
  func.func @transform_4(%arg0: i32) -> (i32, i32) {
    %c0_i32 = arith.constant 0 : i32
    %c0_i32_0 = arith.constant 0 : i32
    %c0_i32_1 = arith.constant 0 : i32
    return %c0_i32, %c0_i32_0 : i32, i32
  }
  func.func @transform_5(%arg0: i32) -> (i32, i32) {
    %c0_i32 = arith.constant 0 : i32
    %c0_i32_0 = arith.constant 0 : i32
    %c0_i32_1 = arith.constant 0 : i32
    return %c0_i32, %c0_i32_0 : i32, i32
  }
  func.func @transform_6(%arg0: i32) -> (i32, i32) {
    %c0_i32 = arith.constant 0 : i32
    %c0_i32_0 = arith.constant 0 : i32
    %c0_i32_1 = arith.constant 0 : i32
    return %c0_i32, %c0_i32_0 : i32, i32
  }
  func.func @transform_7(%arg0: i32) -> (i32, i32) {
    %c0_i32 = arith.constant 0 : i32
    %c0_i32_0 = arith.constant 0 : i32
    %c0_i32_1 = arith.constant 0 : i32
    return %c0_i32, %c0_i32_0 : i32, i32
  }
  func.func @transform_8(%arg0: i32) -> (i32, i32) {
    %c0_i32 = arith.constant 0 : i32
    %c0_i32_0 = arith.constant 0 : i32
    %c0_i32_1 = arith.constant 0 : i32
    return %c0_i32, %c0_i32_0 : i32, i32
  }
  func.func @transform_9(%arg0: i32) -> (i32, i32) {
    %c0_i32 = arith.constant 0 : i32
    %c0_i32_0 = arith.constant 0 : i32
    %c0_i32_1 = arith.constant 0 : i32
    return %c0_i32, %c0_i32_0 : i32, i32
  }
}

</mosaic_0001>

<llo_original>
// kernel: tpu_custom_call.1
$region0: #{tpu_custom_call.1}
  #allocation0 [shape = 'u32[]', space=smem, size = 0x4, offset = 0x4, fixed_abs, tag = 'smem constant byte address 0x4 - core index']
  #allocation1 [shape = 'u32[72,128]{1,0:T(1,128)}', space=vmem, size = 0x9000, scoped, tag = 'internal scratch']
  %s0 = inlined_call_operand.vmem [shape: f32[50,32], index: 0, kind: input, shape index: {}]
  %s1 = inlined_call_operand.vmem [shape: f32[24,32], index: 1, kind: input, shape index: {}]
  %s2 = inlined_call_operand.vmem [shape: f32[50,50], index: 2, kind: input, shape index: {}]
  %s3 = inlined_call_operand.hbm [shape: f32[24,50], index: 3, kind: input, shape index: {}]
  %s4 = inlined_call_operand.vmem [shape: f32[50,24], index: 4, kind: input, shape index: {}]
  %s5 = inlined_call_operand.vmem [shape: f32[32,32], index: 5, kind: input, shape index: {}]
  %s6 = inlined_call_operand.vmem [shape: f32[1,32], index: 6, kind: input, shape index: {}]
  %s7 = inlined_call_operand.vmem [shape: f32[32,32], index: 7, kind: input, shape index: {}]
  %s8 = inlined_call_operand.vmem [shape: f32[1,32], index: 8, kind: input, shape index: {}]
  %s9 = inlined_call_operand.hbm [shape: f32[50,64], index: 9, kind: output, shape index: {}]
  %s10 = sld [smem:[#allocation0]]
  $region50: #{tpu_custom_call.1} parent=0
    _
  %s12 = ssub.s32 1, %s10
  %s13 = scalar_select 0, %s12, %s10
  $region1: #{tpu_custom_call.1} parent=0
    #allocation2 [shape = 'u8[12288]{0}', space=vmem, size = 0x3000, scoped, tag = 'input window, operand 3, single buffered']
    #allocation3 [shape = 's32[1]{0}', space=sflag, size = 0x4, scoped, tag = 'scoped memory for tpu_custom_call.1']
    #allocation4 [shape = 's32[1]{0}', space=sflag, size = 0x4, scoped, tag = 'scoped memory for tpu_custom_call.1']
    #allocation5 [shape = 'u8[28672]{0}', space=vmem, size = 0x7000, scoped, tag = 'output window, operand 0, single buffered']
    %14 = vsyncpa [#allocation3], 0
    %15 = vsyncpa [#allocation4], 0
    // Predicated region
    $region2: #{tpu_custom_call.1} parent=1 // pred_check
      _
    $region3: #{tpu_custom_call.1} parent=1 // pred_check_branch
      %17 = sbr.rel (0) target = $region5
    $region4: #{tpu_custom_call.1} parent=1 // pred_region
      _
    $region5: #{tpu_custom_call.1} parent=1 // pred_fallthru
      _
    // Predicated region
    $region6: #{tpu_custom_call.1} parent=1 // pred_check
      _
    $region7: #{tpu_custom_call.1} parent=1 // pred_check_branch
      %19 = sbr.rel (0) target = $region9
    $region8: #{tpu_custom_call.1} parent=1 // pred_region
      _
    $region9: #{tpu_custom_call.1} parent=1 // pred_fallthru
      _
    // Predicated region
    $region10: #{tpu_custom_call.1} parent=1 // pred_check
      _
    $region11: #{tpu_custom_call.1} parent=1 // pred_check_branch
      %21 = sbr.rel (0) target = $region13
    $region12: #{tpu_custom_call.1} parent=1 // pred_region
      _
    $region13: #{tpu_custom_call.1} parent=1 // pred_fallthru
      _
    // Predicated region
    $region14: #{tpu_custom_call.1} parent=1 // pred_check
      _
    $region15: #{tpu_custom_call.1} parent=1 // pred_check_branch
      %23 = sbr.rel (0) target = $region17
    $region16: #{tpu_custom_call.1} parent=1 // pred_region
      %25 = vsyncadd [#allocation3], 0
      %s26 = sshll.u32 %s3, 4
      %s27 = int_to_ptr.hbm [resolvable:$true] %s26
      %s28 = sshll.u32 [#allocation2], 4
      %s29 = int_to_ptr.vmem [resolvable:$true] %s28
      %34 = dma.hbm_to_vmem [thread:$0]  %s27, 384, %s29, [#allocation3], 128, 128, 8
    $region17: #{tpu_custom_call.1} parent=1 // pred_fallthru
      _
    // Predicated region
    $region18: #{tpu_custom_call.1} parent=1 // pred_check
      _
    $region19: #{tpu_custom_call.1} parent=1 // pred_check_branch
      %36 = sbr.rel (0) target = $region21
    $region20: #{tpu_custom_call.1} parent=1 // pred_region
      _
    $region21: #{tpu_custom_call.1} parent=1 // pred_fallthru
      _
    // Predicated region
    $region22: #{tpu_custom_call.1} parent=1 // pred_check
      _
    $region23: #{tpu_custom_call.1} parent=1 // pred_check_branch
      %38 = sbr.rel (0) target = $region25
    $region24: #{tpu_custom_call.1} parent=1 // pred_region
      _
    $region25: #{tpu_custom_call.1} parent=1 // pred_fallthru
      _
    // Predicated region
    $region26: #{tpu_custom_call.1} parent=1 // pred_check
      _
    $region27: #{tpu_custom_call.1} parent=1 // pred_check_branch
      %40 = sbr.rel (0) target = $region29
    $region28: #{tpu_custom_call.1} parent=1 // pred_region
      _
    $region29: #{tpu_custom_call.1} parent=1 // pred_fallthru
      _
    // Predicated region
    $region30: #{tpu_custom_call.1} parent=1 // pred_check
      _
    $region31: #{tpu_custom_call.1} parent=1 // pred_check_branch
      %42 = sbr.rel (0) target = $region33
    $region32: #{tpu_custom_call.1} parent=1 // pred_region
      _
    $region33: #{tpu_custom_call.1} parent=1 // pred_fallthru
      _
    // Predicated region
    $region34: #{tpu_custom_call.1} parent=1 // pred_check
      _
    $region35: #{tpu_custom_call.1} parent=1 // pred_check_branch
      %44 = sbr.rel (0) target = $region37
    $region36: #{tpu_custom_call.1} parent=1 // pred_region
      _
    $region37: #{tpu_custom_call.1} parent=1 // pred_fallthru
      _
    // Predicated region
    $region38: #{tpu_custom_call.1} parent=1 // pred_check
      _
    $region39: #{tpu_custom_call.1} parent=1 // pred_check_branch
      %46 = sbr.rel (0) target = $region41
    $region40: #{tpu_custom_call.1} parent=1 // pred_region
      %48 = dma.done [#allocation3], 384
    $region41: #{tpu_custom_call.1} parent=1 // pred_fallthru
      _
    %v49 = vld [vmem:[%s0] sm:$0xff]
    %v50 = vld [vmem:[%s0 + $0x8] sm:$0xff]
    %v51 = vld [vmem:[%s0 + $0x10] sm:$0xff]
    %v52 = vld [vmem:[%s0 + $0x18] sm:$0xff]
    %v53 = vld [vmem:[%s0 + $0x20] sm:$0xff]
    %v54 = vld [vmem:[%s0 + $0x28] sm:$0xff]
    %v55 = vld [vmem:[%s0 + $0x30] sm:$0x3]
    %v56 = vld [vmem:[%s2] sm:$0xff]
    %v57 = vld [vmem:[%s2 + $0x8] sm:$0xff]
    %v58 = vld [vmem:[%s2 + $0x10] sm:$0xff]
    %v59 = vld [vmem:[%s2 + $0x18] sm:$0xff]
    %v60 = vld [vmem:[%s2 + $0x20] sm:$0xff]
    %v61 = vld [vmem:[%s2 + $0x28] sm:$0xff]
    %v62 = vld [vmem:[%s2 + $0x30] sm:$0x3]
    %v63 = vld [vmem:[%s5] sm:$0xff]
    %v64 = vld [vmem:[%s5 + $0x8] sm:$0xff]
    %v65 = vld [vmem:[%s5 + $0x10] sm:$0xff]
    %v66 = vld [vmem:[%s5 + $0x18] sm:$0xff]
    %v67 = vld [vmem:[%s6] sm:$0x1]
    %v69 = vperm.slane %v67, 0
    %vm71 = vcmask 261120
    %v73 = vsel %vm71, %v49, 0
    %v76 = vsel %vm71, %v50, 0
    %v79 = vsel %vm71, %v51, 0
    %v82 = vsel %vm71, %v52, 0
    %v85 = vsel %vm71, %v53, 0
    %v88 = vsel %vm71, %v54, 0
    %v91 = vsel %vm71, %v55, 0
    %93 = vmatpush.msra.mxu0 0.0
    %94 = vmatpush.msra.mxu0 0.0
    %95 = vmatpush.msra.mxu0 0.0
    %96 = vmatpush.msra.mxu0 0.0
    %97 = vmatpush.msra.mxu0 0.0
    %98 = vmatpush.msra.mxu0 0.0
    %99 = vmatpush.msra.mxu0 0.0
    %100 = vmatpush.msra.mxu0 0.0
    %101 = vmatpush.msra.mxu0 0.0
    %102 = vmatpush.msra.mxu0 0.0
    %103 = vmatpush.msra.mxu0 0.0
    %104 = vmatpush.msra.mxu0 0.0
    %105 = vmatpush.msra.mxu0 %v66
    %106 = vmatpush.msra.mxu0 %v65
    %107 = vmatpush.msra.mxu0 %v64
    %108 = vmatpush.msra.mxu0 %v63
    %109 = vmatmul.f32.gmra.mxu0 %v73
    %v110 = vpop.f32.mrf.mxu0
    %v111 = vadd.f32 %v69, %v110
    %112 = vmatmul.f32.gmra.mxu0 %v76
    %v113 = vpop.f32.mrf.mxu0
    %v114 = vadd.f32 %v69, %v113
    %115 = vmatmul.f32.gmra.mxu0 %v79
    %v116 = vpop.f32.mrf.mxu0
    %v117 = vadd.f32 %v69, %v116
    %118 = vmatmul.f32.gmra.mxu0 %v82
    %v119 = vpop.f32.mrf.mxu0
    %v120 = vadd.f32 %v69, %v119
    %121 = vmatmul.f32.gmra.mxu0 %v85
    %v122 = vpop.f32.mrf.mxu0
    %v123 = vadd.f32 %v69, %v122
    %124 = vmatmul.f32.gmra.mxu0 %v88
    %v125 = vpop.f32.mrf.mxu0
    %v126 = vadd.f32 %v69, %v125
    %127 = vmatmul.f32.gmra.mxu0 %v91
    %v128 = vpop.f32.mrf.mxu0
    %v129 = vadd.f32 %v69, %v128
    %130 = vdwg.mxu0
    %vm131 = vcmask 408576
    %v133 = vsel %vm131, %v56, 0
    %v136 = vsel %vm131, %v57, 0
    %v139 = vsel %vm131, %v58, 0
    %v142 = vsel %vm131, %v59, 0
    %v145 = vsel %vm131, %v60, 0
    %v148 = vsel %vm131, %v61, 0
    %v151 = vsel %vm131, %v62, 0
    %vm153 = vcmask 1041408
    %v155 = vsel %vm153, %v129, 0
    %157 = vmatpush.msra.mxu0 0.0
    %158 = vmatpush.msra.mxu0 0.0
    %159 = vmatpush.msra.mxu0 0.0
    %160 = vmatpush.msra.mxu0 0.0
    %161 = vmatpush.msra.mxu0 0.0
    %162 = vmatpush.msra.mxu0 0.0
    %163 = vmatpush.msra.mxu0 0.0
    %164 = vmatpush.msra.mxu0 0.0
    %165 = vmatpush.msra.mxu0 0.0
    %166 = vmatpush.msra.mxu0 %v155
    %167 = vmatpush.msra.mxu0 %v126
    %168 = vmatpush.msra.mxu0 %v123
    %169 = vmatpush.msra.mxu0 %v120
    %170 = vmatpush.msra.mxu0 %v117
    %171 = vmatpush.msra.mxu0 %v114
    %172 = vmatpush.msra.mxu0 %v111
    %173 = vmatmul.f32.gmra.mxu0 %v133
    %v174 = vpop.f32.mrf.mxu0
    %v175 = vadd.f32 0.0, %v174
    %176 = vmatmul.f32.gmra.mxu0 %v136
    %v177 = vpop.f32.mrf.mxu0
    %v178 = vadd.f32 0.0, %v177
    %179 = vmatmul.f32.gmra.mxu0 %v139
    %v180 = vpop.f32.mrf.mxu0
    %v181 = vadd.f32 0.0, %v180
    %182 = vmatmul.f32.gmra.mxu0 %v142
    %v183 = vpop.f32.mrf.mxu0
    %v184 = vadd.f32 0.0, %v183
    %185 = vmatmul.f32.gmra.mxu0 %v145
    %v186 = vpop.f32.mrf.mxu0
    %v187 = vadd.f32 0.0, %v186
    %188 = vmatmul.f32.gmra.mxu0 %v148
    %v189 = vpop.f32.mrf.mxu0
    %v190 = vadd.f32 0.0, %v189
    %191 = vmatmul.f32.gmra.mxu0 %v151
    %v192 = vpop.f32.mrf.mxu0
    %v193 = vadd.f32 0.0, %v192
    %194 = vdwg.mxu0
    %v195 = vmax.f32 %v175, 0.0
    %v196 = vmax.f32 %v178, 0.0
    %v197 = vmax.f32 %v181, 0.0
    %v198 = vmax.f32 %v184, 0.0
    %v199 = vmax.f32 %v187, 0.0
    %v200 = vmax.f32 %v190, 0.0
    %v201 = vmax.f32 %v193, 0.0
    %v202 = vld [vmem:[%s7] sm:$0xff]
    %v203 = vld [vmem:[%s7 + $0x8] sm:$0xff]
    %v204 = vld [vmem:[%s7 + $0x10] sm:$0xff]
    %v205 = vld [vmem:[%s7 + $0x18] sm:$0xff]
    %v206 = vld [vmem:[%s8] sm:$0x1]
    %v208 = vperm.slane %v206, 0
    %v211 = vsel %vm71, %v195, 0
    %v214 = vsel %vm71, %v196, 0
    %v217 = vsel %vm71, %v197, 0
    %v220 = vsel %vm71, %v198, 0
    %v223 = vsel %vm71, %v199, 0
    %v226 = vsel %vm71, %v200, 0
    %v229 = vsel %vm71, %v201, 0
    %231 = vmatpush.msra.mxu0 0.0
    %232 = vmatpush.msra.mxu0 0.0
    %233 = vmatpush.msra.mxu0 0.0
    %234 = vmatpush.msra.mxu0 0.0
    %235 = vmatpush.msra.mxu0 0.0
    %236 = vmatpush.msra.mxu0 0.0
    %237 = vmatpush.msra.mxu0 0.0
    %238 = vmatpush.msra.mxu0 0.0
    %239 = vmatpush.msra.mxu0 0.0
    %240 = vmatpush.msra.mxu0 0.0
    %241 = vmatpush.msra.mxu0 0.0
    %242 = vmatpush.msra.mxu0 0.0
    %243 = vmatpush.msra.mxu0 %v205
    %244 = vmatpush.msra.mxu0 %v204
    %245 = vmatpush.msra.mxu0 %v203
    %246 = vmatpush.msra.mxu0 %v202
    %247 = vmatmul.f32.gmra.mxu0 %v211
    %v248 = vpop.f32.mrf.mxu0
    %v249 = vadd.f32 %v208, %v248
    %250 = vmatmul.f32.gmra.mxu0 %v214
    %v251 = vpop.f32.mrf.mxu0
    %v252 = vadd.f32 %v208, %v251
    %253 = vmatmul.f32.gmra.mxu0 %v217
    %v254 = vpop.f32.mrf.mxu0
    %v255 = vadd.f32 %v208, %v254
    %256 = vmatmul.f32.gmra.mxu0 %v220
    %v257 = vpop.f32.mrf.mxu0
    %v258 = vadd.f32 %v208, %v257
    %259 = vmatmul.f32.gmra.mxu0 %v223
    %v260 = vpop.f32.mrf.mxu0
    %v261 = vadd.f32 %v208, %v260
    %262 = vmatmul.f32.gmra.mxu0 %v226
    %v263 = vpop.f32.mrf.mxu0
    %v264 = vadd.f32 %v208, %v263
    %265 = vmatmul.f32.gmra.mxu0 %v229
    %v266 = vpop.f32.mrf.mxu0
    %v267 = vadd.f32 %v208, %v266
    %268 = vdwg.mxu0
    %v270 = vsel %vm153, %v267, 0
    %272 = vmatpush.msra.mxu0 0.0
    %273 = vmatpush.msra.mxu0 0.0
    %274 = vmatpush.msra.mxu0 0.0
    %275 = vmatpush.msra.mxu0 0.0
    %276 = vmatpush.msra.mxu0 0.0
    %277 = vmatpush.msra.mxu0 0.0
    %278 = vmatpush.msra.mxu0 0.0
    %279 = vmatpush.msra.mxu0 0.0
    %280 = vmatpush.msra.mxu0 0.0
    %281 = vmatpush.msra.mxu0 %v270
    %282 = vmatpush.msra.mxu0 %v264
    %283 = vmatpush.msra.mxu0 %v261
    %284 = vmatpush.msra.mxu0 %v258
    %285 = vmatpush.msra.mxu0 %v255
    %286 = vmatpush.msra.mxu0 %v252
    %287 = vmatpush.msra.mxu0 %v249
    %288 = vmatmul.f32.gmra.mxu0 %v133
    %v289 = vpop.f32.mrf.mxu0
    %v290 = vadd.f32 0.0, %v289
    %291 = vmatmul.f32.gmra.mxu0 %v136
    %v292 = vpop.f32.mrf.mxu0
    %v293 = vadd.f32 0.0, %v292
    %294 = vmatmul.f32.gmra.mxu0 %v139
    %v295 = vpop.f32.mrf.mxu0
    %v296 = vadd.f32 0.0, %v295
    %297 = vmatmul.f32.gmra.mxu0 %v142
    %v298 = vpop.f32.mrf.mxu0
    %v299 = vadd.f32 0.0, %v298
    %300 = vmatmul.f32.gmra.mxu0 %v145
    %v301 = vpop.f32.mrf.mxu0
    %v302 = vadd.f32 0.0, %v301
    %303 = vmatmul.f32.gmra.mxu0 %v148
    %v304 = vpop.f32.mrf.mxu0
    %v305 = vadd.f32 0.0, %v304
    %306 = vmatmul.f32.gmra.mxu0 %v151
    %v307 = vpop.f32.mrf.mxu0
    %v308 = vadd.f32 0.0, %v307
    %309 = vdwg.mxu0
    %v310 = vld [vmem:[%s4] sm:$0xff]
    %v311 = vld [vmem:[%s4 + $0x8] sm:$0xff]
    %v312 = vld [vmem:[%s4 + $0x10] sm:$0xff]
    %v313 = vld [vmem:[%s4 + $0x18] sm:$0xff]
    %v314 = vld [vmem:[%s4 + $0x20] sm:$0xff]
    %v315 = vld [vmem:[%s4 + $0x28] sm:$0xff]
    %v316 = vld [vmem:[%s4 + $0x30] sm:$0x3]
    %v317 = vld [vmem:[%s1] sm:$0xff]
    %v318 = vld [vmem:[%s1 + $0x8] sm:$0xff]
    %v319 = vld [vmem:[%s1 + $0x10] sm:$0xff]
    %vm320 = vcmask 195584
    %v322 = vsel %vm320, %v310, 0
    %v325 = vsel %vm320, %v311, 0
    %v328 = vsel %vm320, %v312, 0
    %v331 = vsel %vm320, %v313, 0
    %v334 = vsel %vm320, %v314, 0
    %v337 = vsel %vm320, %v315, 0
    %v340 = vsel %vm320, %v316, 0
    %342 = vmatpush.msra.mxu0 0.0
    %343 = vmatpush.msra.mxu0 0.0
    %344 = vmatpush.msra.mxu0 0.0
    %345 = vmatpush.msra.mxu0 0.0
    %346 = vmatpush.msra.mxu0 0.0
    %347 = vmatpush.msra.mxu0 0.0
    %348 = vmatpush.msra.mxu0 0.0
    %349 = vmatpush.msra.mxu0 0.0
    %350 = vmatpush.msra.mxu0 0.0
    %351 = vmatpush.msra.mxu0 0.0
    %352 = vmatpush.msra.mxu0 0.0
    %353 = vmatpush.msra.mxu0 0.0
    %354 = vmatpush.msra.mxu0 0.0
    %355 = vmatpush.msra.mxu0 %v319
    %356 = vmatpush.msra.mxu0 %v318
    %357 = vmatpush.msra.mxu0 %v317
    %358 = vmatmul.f32.gmra.mxu0 %v322
    %v359 = vpop.f32.mrf.mxu0
    %v360 = vadd.f32 0.0, %v359
    %361 = vmatmul.f32.gmra.mxu0 %v325
    %v362 = vpop.f32.mrf.mxu0
    %v363 = vadd.f32 0.0, %v362
    %364 = vmatmul.f32.gmra.mxu0 %v328
    %v365 = vpop.f32.mrf.mxu0
    %v366 = vadd.f32 0.0, %v365
    %367 = vmatmul.f32.gmra.mxu0 %v331
    %v368 = vpop.f32.mrf.mxu0
    %v369 = vadd.f32 0.0, %v368
    %370 = vmatmul.f32.gmra.mxu0 %v334
    %v371 = vpop.f32.mrf.mxu0
    %v372 = vadd.f32 0.0, %v371
    %373 = vmatmul.f32.gmra.mxu0 %v337
    %v374 = vpop.f32.mrf.mxu0
    %v375 = vadd.f32 0.0, %v374
    %376 = vmatmul.f32.gmra.mxu0 %v340
    %v377 = vpop.f32.mrf.mxu0
    %v378 = vadd.f32 0.0, %v377
    %379 = vdwg.mxu0
    %v380 = vld [vmem:[#allocation2] sm:$0xff]
    %v381 = vld [vmem:[#allocation2 + $0x8] sm:$0xff]
    %v382 = vld [vmem:[#allocation2 + $0x10] sm:$0xff]
    %v384 = vsel %vm131, %v380, 0
    %v387 = vsel %vm131, %v381, 0
    %v390 = vsel %vm131, %v382, 0
    %v392 = vsel %vm153, %v55, 0
    %394 = vmatpush.msra.mxu0 0.0
    %395 = vmatpush.msra.mxu0 0.0
    %396 = vmatpush.msra.mxu0 0.0
    %397 = vmatpush.msra.mxu0 0.0
    %398 = vmatpush.msra.mxu0 0.0
    %399 = vmatpush.msra.mxu0 0.0
    %400 = vmatpush.msra.mxu0 0.0
    %401 = vmatpush.msra.mxu0 0.0
    %402 = vmatpush.msra.mxu0 0.0
    %403 = vmatpush.msra.mxu0 %v392
    %404 = vmatpush.msra.mxu0 %v54
    %405 = vmatpush.msra.mxu0 %v53
    %406 = vmatpush.msra.mxu0 %v52
    %407 = vmatpush.msra.mxu0 %v51
    %408 = vmatpush.msra.mxu0 %v50
    %409 = vmatpush.msra.mxu0 %v49
    %410 = vmatmul.f32.gmra.mxu0 %v384
    %v411 = vpop.f32.mrf.mxu0
    %v412 = vadd.f32 0.0, %v411
    %413 = vmatmul.f32.gmra.mxu0 %v387
    %v414 = vpop.f32.mrf.mxu0
    %v415 = vadd.f32 0.0, %v414
    %416 = vmatmul.f32.gmra.mxu0 %v390
    %v417 = vpop.f32.mrf.mxu0
    %v418 = vadd.f32 0.0, %v417
    %419 = vdwg.mxu0
    %420 = vmatpush.msra.mxu0 0.0
    %421 = vmatpush.msra.mxu0 0.0
    %422 = vmatpush.msra.mxu0 0.0
    %423 = vmatpush.msra.mxu0 0.0
    %424 = vmatpush.msra.mxu0 0.0
    %425 = vmatpush.msra.mxu0 0.0
    %426 = vmatpush.msra.mxu0 0.0
    %427 = vmatpush.msra.mxu0 0.0
    %428 = vmatpush.msra.mxu0 0.0
    %429 = vmatpush.msra.mxu0 0.0
    %430 = vmatpush.msra.mxu0 0.0
    %431 = vmatpush.msra.mxu0 0.0
    %432 = vmatpush.msra.mxu0 0.0
    %433 = vmatpush.msra.mxu0 %v418
    %434 = vmatpush.msra.mxu0 %v415
    %435 = vmatpush.msra.mxu0 %v412
    %436 = vmatmul.f32.gmra.mxu0 %v322
    %v437 = vpop.f32.mrf.mxu0
    %v438 = vadd.f32 0.0, %v437
    %439 = vmatmul.f32.gmra.mxu0 %v325
    %v440 = vpop.f32.mrf.mxu0
    %v441 = vadd.f32 0.0, %v440
    %442 = vmatmul.f32.gmra.mxu0 %v328
    %v443 = vpop.f32.mrf.mxu0
    %v444 = vadd.f32 0.0, %v443
    %445 = vmatmul.f32.gmra.mxu0 %v331
    %v446 = vpop.f32.mrf.mxu0
    %v447 = vadd.f32 0.0, %v446
    %448 = vmatmul.f32.gmra.mxu0 %v334
    %v449 = vpop.f32.mrf.mxu0
    %v450 = vadd.f32 0.0, %v449
    %451 = vmatmul.f32.gmra.mxu0 %v337
    %v452 = vpop.f32.mrf.mxu0
    %v453 = vadd.f32 0.0, %v452
    %454 = vmatmul.f32.gmra.mxu0 %v340
    %v455 = vpop.f32.mrf.mxu0
    %v456 = vadd.f32 0.0, %v455
    %457 = vdwg.mxu0
    %v458 = vadd.f32 %v49, %v360
    %v459 = vadd.f32 %v50, %v363
    %v460 = vadd.f32 %v51, %v366
    %v461 = vadd.f32 %v52, %v369
    %v462 = vadd.f32 %v53, %v372
    %v463 = vadd.f32 %v54, %v375
    %v464 = vadd.f32 %v55, %v378
    %v465 = vadd.f32 %v458, %v438
    %v466 = vadd.f32 %v459, %v441
    %v467 = vadd.f32 %v460, %v444
    %v468 = vadd.f32 %v461, %v447
    %v469 = vadd.f32 %v462, %v450
    %v470 = vadd.f32 %v463, %v453
    %v471 = vadd.f32 %v464, %v456
    %v472 = vmul.f32 %v465, 0.33333334
    %v473 = vmul.f32 %v466, 0.33333334
    %v474 = vmul.f32 %v467, 0.33333334
    %v475 = vmul.f32 %v468, 0.33333334
    %v476 = vmul.f32 %v469, 0.33333334
    %v477 = vmul.f32 %v470, 0.33333334
    %v478 = vmul.f32 %v471, 0.33333334
    %486 = vrot.lane.b32.xlu0 %v472, 32
    %v487 = vpop.permute.xlu0 %486
    %488 = vrot.lane.b32.xlu0 %v473, 32
    %v489 = vpop.permute.xlu0 %488
    %490 = vrot.lane.b32.xlu0 %v474, 32
    %v491 = vpop.permute.xlu0 %490
    %492 = vrot.lane.b32.xlu0 %v475, 32
    %v493 = vpop.permute.xlu0 %492
    %494 = vrot.lane.b32.xlu0 %v476, 32
    %v495 = vpop.permute.xlu0 %494
    %496 = vrot.lane.b32.xlu0 %v477, 32
    %v497 = vpop.permute.xlu0 %496
    %498 = vrot.lane.b32.xlu0 %v478, 32
    %v499 = vpop.permute.xlu0 %498
    %v507 = vsel %vm71, %v290, %v487
    %v508 = vsel %vm71, %v293, %v489
    %v509 = vsel %vm71, %v296, %v491
    %v510 = vsel %vm71, %v299, %v493
    %v511 = vsel %vm71, %v302, %v495
    %v512 = vsel %vm71, %v305, %v497
    %v513 = vsel %vm71, %v308, %v499
    %vm514 = vcmask 523264
    %515 = vst.msk [vmem:[#allocation5] sm:$0xff] %vm514, %v507
    %516 = vst.msk [vmem:[#allocation5 + $0x8] sm:$0xff] %vm514, %v508
    %517 = vst.msk [vmem:[#allocation5 + $0x10] sm:$0xff] %vm514, %v509
    %518 = vst.msk [vmem:[#allocation5 + $0x18] sm:$0xff] %vm514, %v510
    %519 = vst.msk [vmem:[#allocation5 + $0x20] sm:$0xff] %vm514, %v511
    %520 = vst.msk [vmem:[#allocation5 + $0x28] sm:$0xff] %vm514, %v512
    %vm521 = vcmask 517120
    %522 = vst.msk [vmem:[#allocation5 + $0x30] sm:$0x3] %vm521, %v513
    // Predicated region
    $region42: #{tpu_custom_call.1} parent=1 // pred_check
      _
    $region43: #{tpu_custom_call.1} parent=1 // pred_check_branch
      %524 = sbr.rel (0) target = $region45
    $region44: #{tpu_custom_call.1} parent=1 // pred_region
      %526 = vsyncadd [#allocation4], 0
      %s527 = sshll.u32 [#allocation5], 4
      %s528 = int_to_ptr.vmem [resolvable:$true] %s527
      %s529 = sshll.u32 %s9, 4
      %s530 = int_to_ptr.hbm [resolvable:$true] %s529
      %535 = dma.vmem_to_hbm [thread:$0]  %s528, 896, %s530, [#allocation4], 128, 128, 8
    $region45: #{tpu_custom_call.1} parent=1 // pred_fallthru
      _
    // Predicated region
    $region46: #{tpu_custom_call.1} parent=1 // pred_check
      _
    $region47: #{tpu_custom_call.1} parent=1 // pred_check_branch
      %537 = sbr.rel (0) target = $region49
    $region48: #{tpu_custom_call.1} parent=1 // pred_region
      %539 = dma.done [#allocation4], 896
    $region49: #{tpu_custom_call.1} parent=1 // pred_fallthru
      _
    %540 = vsyncpa [#allocation3], 1
    %541 = vsyncpa [#allocation4], 1

</llo_original>
